<compile_context>
chip_gen: v6e
topology: v6e:2x2x1
jax: 0.10.0
libtpu: 0.0.40
codegen_flags: <defaults>
</compile_context>

<pallas_src>
import jax
import jax.numpy as jnp
from jax.experimental import pallas as pl
from jax.experimental.pallas import tpu as pltpu


def _round_up(x, m):
    return ((x + m - 1) // m) * m


def _rbf_kernel(lhs_ref, rhs_ref, o_ref):
    # Scaled squared distance comes straight off the MXU:
    #   dot(lhs, rhs)[i, j] = (||x_i||^2 + ||x'_j||^2 - 2 x_i.x'_j) / (2 ls^2)
    scaled = jnp.dot(lhs_ref[...], rhs_ref[...],
                     preferred_element_type=jnp.float32)      # (tn, tm)
    # cdist returns sqrt(clamp(.,0)); squaring it == clamp(dist_sq, 0).
    scaled = jnp.maximum(scaled, 0.0)
    o_ref[...] = jnp.exp(-scaled).astype(o_ref.dtype)


def rbf_kernel(X, X_prime, log_length_scale, *, tn=512, tm=1024,
               out_dtype=jnp.float32):
    """X: (N, D) f32, X_prime: (M, D) f32, log_length_scale: () or (1,) f32."""
    N, D = X.shape
    M, Dp = X_prime.shape
    assert D == Dp

    X = jnp.asarray(X, jnp.float32)
    X_prime = jnp.asarray(X_prime, jnp.float32)
    log_ls = jnp.asarray(log_length_scale, jnp.float32).reshape(())

    # ---- grid-invariant preprocessing (one-time XLA ops, not the hot path) ----
    inv_two_ls_sq = 0.5 * jnp.exp(-2.0 * log_ls)              # 1 / (2 ls^2)
    x_sq = jnp.sum(X * X, axis=-1, keepdims=True)             # (N, 1)
    xp_sq = jnp.sum(X_prime * X_prime, axis=-1)[None, :]      # (1, M)
    ones_n = jnp.ones((N, 1), jnp.float32)
    ones_m = jnp.ones((1, M), jnp.float32)

    lhs = inv_two_ls_sq * jnp.concatenate([-2.0 * X, x_sq, ones_n], axis=1)  # (N, K)
    rhs = jnp.concatenate([X_prime.T, ones_m, xp_sq], axis=0)                # (K, M)
    K = D + 2

    # ---- tiling: lane-dense, (sublane,128)-aligned; ragged last blocks masked ----
    out_bytes = jnp.dtype(out_dtype).itemsize
    sub = 8 * max(1, 4 // out_bytes)          # 8 for f32 output, 16 for bf16
    tn_eff = min(_round_up(tn, sub), _round_up(N, sub))
    tm_eff = min(_round_up(tm, 128), _round_up(M, 128))

    # v7x megacore: make sure a 'parallel' axis has >=2 blocks for small problems.
    if pl.cdiv(N, tn_eff) == 1 and pl.cdiv(M, tm_eff) == 1:
        if N >= 2 * sub:
            tn_eff = _round_up(pl.cdiv(N, 2), sub)
        elif M >= 256:
            tm_eff = _round_up(pl.cdiv(M, 2), 128)

    grid = (pl.cdiv(N, tn_eff), pl.cdiv(M, tm_eff))

    # ---- VMEM budget (double-buffered); LHS is lane-padded K -> 128 in VMEM ----
    tile_bytes = (tn_eff * 128 * 4                   # LHS tile (lane-padded)
                  + _round_up(K, 8) * tm_eff * 4     # RHS tile (sublane-padded)
                  + tn_eff * tm_eff * out_bytes)     # output tile
    try:
        vmem_cap = int(pltpu.get_tpu_info().vmem_capacity_bytes)
    except Exception:
        vmem_cap = 64 << 20                          # conservative (v7x per-TC)
    vmem_limit = int(min(max(4 * tile_bytes, 8 << 20), (vmem_cap * 3) // 4))

    cost = pl.CostEstimate(
        flops=2 * N * M * K + N * M,
        transcendentals=N * M,
        bytes_accessed=4 * (N * K + K * M) + out_bytes * N * M,
    )

    return pl.pallas_call(
        _rbf_kernel,
        out_shape=jax.ShapeDtypeStruct((N, M), out_dtype),
        grid=grid,
        in_specs=[
            pl.BlockSpec((tn_eff, K), lambda i, j: (i, 0)),     # augmented X tile
            pl.BlockSpec((K, tm_eff), lambda i, j: (0, j)),     # augmented X'^T tile
        ],
        out_specs=pl.BlockSpec((tn_eff, tm_eff), lambda i, j: (i, j)),
        compiler_params=pltpu.CompilerParams(
            dimension_semantics=("parallel", "parallel"),
            vmem_limit_bytes=vmem_limit),
        cost_estimate=cost,
    )(lhs, rhs)


class RBFKernelPallas:
    """Mirror of the PyTorch RBFKernel module (learnable flag only affects
    whether the scalar would be trained — identical forward either way)."""

    def __init__(self, length_scale=1.0, learnable=False):
        self.log_length_scale = jnp.asarray(jnp.log(length_scale), jnp.float32)

    def __call__(self, X, X_prime, kernel_param=None):
        log_ls = kernel_param if kernel_param is not None else self.log_length_scale
        return rbf_kernel(X, X_prime, log_ls)


if __name__ == "__main__":
    key = jax.random.PRNGKey(0)
    kx, kxp = jax.random.split(key)

    # Small demo shapes (non-multiple-of-128 M exercises the masked last block).
    N, M, D = 128, 96, 16
    X = jax.random.normal(kx, (N, D), dtype=jnp.float32)
    X_prime = jax.random.normal(kxp, (M, D), dtype=jnp.float32)

    mod = RBFKernelPallas(length_scale=1.5)
    out = mod(X, X_prime)
    out = jax.block_until_ready(out)

    # pure-JAX reference (glue, not part of the hot path)
    ls = jnp.exp(mod.log_length_scale)
    d2 = jnp.sum((X[:, None, :] - X_prime[None, :, :]) ** 2, axis=-1)
    ref = jnp.exp(-d2 / (2.0 * ls ** 2))
    assert out.shape == (N, M)
    # Tolerance accounts for the norm-expansion vs direct-difference formulation.
    assert jnp.allclose(out, ref, atol=1e-4, rtol=1e-4)

    print("KERNEL_OK")
</pallas_src>

<mosaic_0001>
module attributes {stable_mosaic.version = 11 : i64} {
  func.func @_rbf_kernel(%arg0: i32, %arg1: i32, %arg2: memref<64x18xf32, #tpu.memory_space<vmem>>, %arg3: memref<18x128xf32, #tpu.memory_space<vmem>>, %arg4: memref<64x128xf32, #tpu.memory_space<vmem>>) attributes {dimension_semantics = [#tpu.dimension_semantics<parallel>, #tpu.dimension_semantics<parallel>], iteration_bounds = array<i64: 2, 1>, scalar_prefetch = 0 : i64, scratch_operands = 0 : i64, tpu.core_type = #tpu.core_type<tc>, window_params = [{transform_indices = @transform_0, window_bounds = array<i64: 64, 18>}, {transform_indices = @transform_1, window_bounds = array<i64: 18, 128>}, {transform_indices = @transform_2, window_bounds = array<i64: 64, 128>}]} {
    %c0 = arith.constant 0 : index
    %c0_0 = arith.constant 0 : index
    %0 = vector.load %arg2[%c0, %c0_0] : memref<64x18xf32, #tpu.memory_space<vmem>>, vector<64x18xf32>
    %c0_1 = arith.constant 0 : index
    %c0_2 = arith.constant 0 : index
    %1 = vector.load %arg3[%c0_1, %c0_2] : memref<18x128xf32, #tpu.memory_space<vmem>>, vector<18x128xf32>
    %cst = arith.constant dense<0.000000e+00> : vector<64x128xf32>
    %2 = tpu.matmul %0, %1, %cst {dimension_numbers = #tpu.dot_dimension_numbers<[1], [0], [0], [1], [0, 0, 1, 1], [], []>} : vector<64x18xf32>, vector<18x128xf32>, vector<64x128xf32> -> vector<64x128xf32>
    %cst_3 = arith.constant 0.000000e+00 : f32
    %3 = vector.broadcast %cst_3 : f32 to vector<64x128xf32>
    %4 = arith.maximumf %2, %3 : vector<64x128xf32>
    %cst_4 = arith.constant 0.000000e+00 : f32
    %5 = vector.broadcast %cst_4 : f32 to vector<64x128xf32>
    %6 = arith.subf %5, %4 : vector<64x128xf32>
    %7 = math.exp %6 : vector<64x128xf32>
    %c0_5 = arith.constant 0 : index
    %c0_6 = arith.constant 0 : index
    %8 = vector.load %arg4[%c0_5, %c0_6] : memref<64x128xf32, #tpu.memory_space<vmem>>, vector<64x128xf32>
    tpu.vector_store %arg4[%c0_5, %c0_6], %7 {strides = array<i32>} : memref<64x128xf32, #tpu.memory_space<vmem>>, vector<64x128xf32>,
    return
  }
  func.func @transform_0(%arg0: i32, %arg1: i32) -> (i32, i32) {
    %c0_i32 = arith.constant 0 : i32
    %c0_i32_0 = arith.constant 0 : i32
    return %arg0, %c0_i32 : i32, i32
  }
  func.func @transform_1(%arg0: i32, %arg1: i32) -> (i32, i32) {
    %c0_i32 = arith.constant 0 : i32
    %c0_i32_0 = arith.constant 0 : i32
    return %c0_i32, %arg1 : i32, i32
  }
  func.func @transform_2(%arg0: i32, %arg1: i32) -> (i32, i32) {
    %c0_i32 = arith.constant 0 : i32
    return %arg0, %arg1 : i32, i32
  }
}

</mosaic_0001>

<llo_original>
// kernel: tpu_custom_call.1
$region0: #{tpu_custom_call.1}
  #allocation0 [shape = 'u32[]', space=smem, size = 0x4, offset = 0x4, fixed_abs, tag = 'smem constant byte address 0x4 - core index']
  #allocation1 [shape = 'u32[144,128]{1,0:T(1,128)}', space=vmem, size = 0x12000, scoped, tag = 'internal scratch']
  %s0 = inlined_call_operand.vmem [shape: f32[128,18], index: 0, kind: input, shape index: {}]
  %s1 = inlined_call_operand.vmem [shape: f32[18,96], index: 1, kind: input, shape index: {}]
  %s2 = inlined_call_operand.vmem [shape: f32[128,96], index: 2, kind: output, shape index: {}]
  %s3 = sld [smem:[#allocation0]]
  $region41: #{tpu_custom_call.1} parent=0
    _
  %s5 = ssub.s32 1, %s3
  %s6 = scalar_select 0, %s5, %s3
  loop: start=0, step=1, limit=4
  $region2: #{tpu_custom_call.1} parent=0 // loop_pre_header
    _
  $region3: #{tpu_custom_call.1} parent=0 // loop_header
    %s8 = sphi 0, %s12
    %p9 = scmp.ge.s32.totalorder %s8, 4
    %s15 = sphi 0, %s27
    %s16 = sphi 0, %s23
    %s17 = sphi 0, %s15
    %s18 = sphi 0, %s16
    %s19 = sphi 0, %s17
    %s20 = sphi 0, %s18
    %s30 = sphi 0, %s32
    %s33 = sphi 0, %s30
    %s34 = sphi 0, %s33
    %s50 = sphi 0, %s34
    %s56 = sphi 0, %s58
    %s59 = sphi 0, %s56
    %s60 = sphi 0, %s59
    %s76 = sphi 0, %s60
    %s84 = sphi 0, %s86
    %s87 = sphi 0, %s84
    %s88 = sphi 0, %s87
    %s104 = sphi 0, %s88
  $region4: #{tpu_custom_call.1} parent=0 // loop_header_branch
    %11 = sbr.rel (%p9) target = $region8
  $region5: #{tpu_custom_call.1} parent=0 // loop_body
    %s13 = ssub.s32 %s8, 1
    %s14 = ssub.s32 %s8, 2
    %s21 = sadd.s32 1, %s16
    %p22 = scmp.ge.s32.totalorder %s21, 1
    %s23 = scalar_select %p22, 0, %s21
    %s24 = sadd.s32 1, %s15
    %s25 = scalar_select %p22, %s24, %s15
    %p26 = scmp.ge.s32.totalorder %s25, 2
    %s27 = scalar_select %p26, 0, %s25
    %s28 = ssub.s32 %s15, %s27
    %p29 = scmp.eq.s32.totalorder %s28, 0
    %s31 = sadd.s32 %s30, 1
    %s32 = scalar_select %p29, %s30, %s31
    %p35 = pneg %p29
    %p36 = scmp.eq.s32.totalorder %s8, 1
    %p37 = por %p35, %p36
    %p38 = scmp.ne.s32.totalorder %s30, %s33
    %p39 = scmp.eq.s32.totalorder %s8, 0
    %p40 = por %p38, %p39
    %p41 = scmp.ne.s32.totalorder %s30, %s33
    %p42 = scmp.eq.s32.totalorder %s13, 1
    %p43 = por %p41, %p42
    %p44 = scmp.ne.s32.totalorder %s33, %s34
    %p45 = scmp.eq.s32.totalorder %s13, 0
    %p46 = por %p44, %p45
    %p47 = scmp.ne.s32.totalorder %s33, %s34
    %p48 = scmp.eq.s32.totalorder %s14, 1
    %p49 = por %p47, %p48
    %p51 = scmp.ne.s32.totalorder %s34, %s50
    %p52 = scmp.eq.s32.totalorder %s14, 0
    %p53 = por %p51, %p52
    %s54 = ssub.s32 %s16, %s23
    %p55 = scmp.eq.s32.totalorder %s54, 0
    %s57 = sadd.s32 %s56, 1
    %s58 = scalar_select %p55, %s56, %s57
    %p61 = pneg %p55
    %p62 = scmp.eq.s32.totalorder %s8, 1
    %p63 = por %p61, %p62
    %p64 = scmp.ne.s32.totalorder %s56, %s59
    %p65 = scmp.eq.s32.totalorder %s8, 0
    %p66 = por %p64, %p65
    %p67 = scmp.ne.s32.totalorder %s56, %s59
    %p68 = scmp.eq.s32.totalorder %s13, 1
    %p69 = por %p67, %p68
    %p70 = scmp.ne.s32.totalorder %s59, %s60
    %p71 = scmp.eq.s32.totalorder %s13, 0
    %p72 = por %p70, %p71
    %p73 = scmp.ne.s32.totalorder %s59, %s60
    %p74 = scmp.eq.s32.totalorder %s14, 1
    %p75 = por %p73, %p74
    %p77 = scmp.ne.s32.totalorder %s60, %s76
    %p78 = scmp.eq.s32.totalorder %s14, 0
    %p79 = por %p77, %p78
    %s80 = ssub.s32 %s15, %s27
    %s81 = ssub.s32 %s16, %s23
    %s82 = sor.u32 %s80, %s81
    %p83 = scmp.eq.s32.totalorder %s82, 0
    %s85 = sadd.s32 %s84, 1
    %s86 = scalar_select %p83, %s84, %s85
    %p89 = pneg %p83
    %p90 = scmp.eq.s32.totalorder %s8, 1
    %p91 = por %p89, %p90
    %p92 = scmp.ne.s32.totalorder %s84, %s87
    %p93 = scmp.eq.s32.totalorder %s8, 0
    %p94 = por %p92, %p93
    %p95 = scmp.ne.s32.totalorder %s84, %s87
    %p96 = scmp.eq.s32.totalorder %s13, 1
    %p97 = por %p95, %p96
    %p98 = scmp.ne.s32.totalorder %s87, %s88
    %p99 = scmp.eq.s32.totalorder %s13, 0
    %p100 = por %p98, %p99
    %p101 = scmp.ne.s32.totalorder %s87, %s88
    %p102 = scmp.eq.s32.totalorder %s14, 1
    %p103 = por %p101, %p102
    %p105 = scmp.ne.s32.totalorder %s88, %s104
    %p106 = scmp.eq.s32.totalorder %s14, 0
    %p107 = por %p105, %p106
    %p108 = scmp.le.s32.totalorder 1, %s8
    %p109 = scmp.lt.s32.totalorder %s8, 3
    %p110 = pnand %p108, %p109
    %p111 = pneg %p110
    // Predicated region
    $region9: #{tpu_custom_call.1} parent=5 // pred_check
      _
    $region10: #{tpu_custom_call.1} parent=5 // pred_check_branch
      %113 = sbr.rel (%p110) target = $region12
    $region11: #{tpu_custom_call.1} parent=5 // pred_region
      %s114 = ssub.s32 %s8, 1
      // Predicated region
      $region13: #{tpu_custom_call.1} parent=11 // pred_check
        %p115 = pneg %p72
      $region14: #{tpu_custom_call.1} parent=11 // pred_check_branch
        %117 = sbr.rel (%p115) target = $region16
      $region15: #{tpu_custom_call.1} parent=11 // pred_region
        %p118 = scmp.lt.s32.totalorder %s18, 0
        %s119 = scalar_select %p118, %s18, 0
        %s120 = smul.addr %s119, 8
        %s121 = scalar_lea.vmem %s1, %s120
      $region16: #{tpu_custom_call.1} parent=11 // pred_fallthru
        _
    $region12: #{tpu_custom_call.1} parent=5 // pred_fallthru
      _
    %p122 = scmp.lt.s32.totalorder %s8, 2
    // Predicated region
    $region17: #{tpu_custom_call.1} parent=5 // pred_check
      %p123 = pneg %p122
    $region18: #{tpu_custom_call.1} parent=5 // pred_check_branch
      %125 = sbr.rel (%p123) target = $region20
    $region19: #{tpu_custom_call.1} parent=5 // pred_region
      // Predicated region
      $region21: #{tpu_custom_call.1} parent=19 // pred_check
        %p126 = pneg %p40
      $region22: #{tpu_custom_call.1} parent=19 // pred_check_branch
        %128 = sbr.rel (%p126) target = $region24
      $region23: #{tpu_custom_call.1} parent=19 // pred_region
        %s129 = smul.u32 8, %s15
        %p130 = scmp.lt.s32.totalorder %s129, 15
        %s131 = scalar_select %p130, %s129, 15
        %s132 = smul.addr %s131, 8
        %s133 = scalar_lea.vmem %s0, %s132
        %s134 = smul.u32 8, %s15
      $region24: #{tpu_custom_call.1} parent=19 // pred_fallthru
        _
    $region20: #{tpu_custom_call.1} parent=5 // pred_fallthru
      _
    %p135 = scmp.le.s32.totalorder 1, %s8
    %p136 = scmp.lt.s32.totalorder %s8, 3
    %p137 = pnand %p135, %p136
    %p138 = pneg %p137
    // Predicated region
    $region25: #{tpu_custom_call.1} parent=5 // pred_check
      _
    $region26: #{tpu_custom_call.1} parent=5 // pred_check_branch
      %140 = sbr.rel (%p137) target = $region28
    $region27: #{tpu_custom_call.1} parent=5 // pred_region
      %s141 = ssub.s32 %s8, 1
      %s142 = smul.u32 8, %s17
      %p143 = scmp.lt.s32.totalorder %s142, 15
      %s144 = scalar_select %p143, %s142, 15
      %s145 = smul.addr %s144, 8
      %s146 = scalar_lea.vmem %s0, %s145
      %p147 = pneg %p46
      %p148 = pneg %p43
      %p149 = scmp.lt.s32.totalorder %s18, 0
      %s150 = scalar_select %p149, %s18, 0
      %s151 = smul.addr %s150, 8
      %s152 = scalar_lea.vmem %s1, %s151
      %p153 = pneg %p72
      %p154 = pneg %p69
      %p155 = pneg %p100
      %p156 = pneg %p97
      %s157 = smul.u32 8, %s17
      %p158 = scmp.lt.s32.totalorder %s157, 15
      %s159 = scalar_select %p158, %s157, 15
      %p160 = scmp.lt.s32.totalorder %s18, 0
      %s161 = scalar_select %p160, %s18, 0
      %s162 = sadd.s32 %s161, %s159
      %s163 = smul.addr %s162, 8
      %s164 = scalar_lea.vmem %s2, %s163
      %s165 = smul.u32 8, %s17
      %p166 = scmp.lt.s32.totalorder %s165, 15
      %s167 = scalar_select %p166, %s165, 15
      %s168 = smul.addr %s167, 8
      %s169 = scalar_lea.vmem %s0, %s168
      %s170 = smul.u32 8, %s17
      %p171 = scmp.lt.s32.totalorder %s18, 0
      %s172 = scalar_select %p171, %s18, 0
      %s173 = smul.addr %s172, 8
      %s174 = scalar_lea.vmem %s1, %s173
      %s175 = smul.u32 8, %s17
      %p176 = scmp.lt.s32.totalorder %s175, 15
      %s177 = scalar_select %p176, %s175, 15
      %p178 = scmp.lt.s32.totalorder %s18, 0
      %s179 = scalar_select %p178, %s18, 0
      %s180 = sadd.s32 %s179, %s177
      %s181 = smul.addr %s180, 8
      %s182 = scalar_lea.vmem %s2, %s181
      %s183 = smul.u32 8, %s17
      %v184 = vld [vmem:[%s169] sm:$0xff]
      %v185 = vld [vmem:[%s169 + $0x8] sm:$0xff]
      %v186 = vld [vmem:[%s169 + $0x10] sm:$0xff]
      %v187 = vld [vmem:[%s169 + $0x18] sm:$0xff]
      %v188 = vld [vmem:[%s169 + $0x20] sm:$0xff]
      %v189 = vld [vmem:[%s169 + $0x28] sm:$0xff]
      %v190 = vld [vmem:[%s169 + $0x30] sm:$0xff]
      %v191 = vld [vmem:[%s169 + $0x38] sm:$0xff]
      %v192 = vld [vmem:[%s174] sm:$0xff]
      %v193 = vld [vmem:[%s174 + $0x8] sm:$0xff]
      %v194 = vld [vmem:[%s174 + $0x10] sm:$0x3]
      %vm195 = vcmask 146432
      %v197 = vsel %vm195, %v184, 0
      %v200 = vsel %vm195, %v185, 0
      %v203 = vsel %vm195, %v186, 0
      %v206 = vsel %vm195, %v187, 0
      %v209 = vsel %vm195, %v188, 0
      %v212 = vsel %vm195, %v189, 0
      %v215 = vsel %vm195, %v190, 0
      %v218 = vsel %vm195, %v191, 0
      %vm220 = vcmask 1041408
      %v222 = vsel %vm220, %v194, 0
      %224 = vmatprep.subr.mxu0 0.0
      %225 = vmatpush1.msra.mxu0 0.0
      %226 = vmatprep.subr.mxu0 0.0
      %227 = vmatpush1.msra.mxu0 0.0
      %228 = vmatprep.subr.mxu0 0.0
      %229 = vmatpush1.msra.mxu0 0.0
      %230 = vmatprep.subr.mxu0 0.0
      %231 = vmatpush1.msra.mxu0 0.0
      %232 = vmatprep.subr.mxu0 0.0
      %233 = vmatpush1.msra.mxu0 0.0
      %234 = vmatprep.subr.mxu0 0.0
      %235 = vmatpush1.msra.mxu0 0.0
      %236 = vmatprep.subr.mxu0 0.0
      %237 = vmatpush1.msra.mxu0 0.0
      %238 = vmatprep.subr.mxu0 0.0
      %239 = vmatpush1.msra.mxu0 0.0
      %240 = vmatprep.subr.mxu0 0.0
      %241 = vmatpush1.msra.mxu0 0.0
      %242 = vmatprep.subr.mxu0 0.0
      %243 = vmatpush1.msra.mxu0 0.0
      %244 = vmatprep.subr.mxu0 0.0
      %245 = vmatpush1.msra.mxu0 0.0
      %246 = vmatprep.subr.mxu0 0.0
      %247 = vmatpush1.msra.mxu0 0.0
      %248 = vmatprep.subr.mxu0 0.0
      %249 = vmatpush1.msra.mxu0 0.0
      %250 = vmatprep.subr.mxu0 0.0
      %251 = vmatpush1.msra.mxu0 %v222
      %252 = vmatprep.subr.mxu0 0.0
      %253 = vmatpush1.msra.mxu0 %v193
      %254 = vmatprep.subr.mxu0 0.0
      %255 = vmatpush1.msra.mxu0 %v192
      %256 = vmatprep.subr.mxu0 0.0
      %257 = vmatpush2.msra.mxu0 0.0
      %258 = vmatprep.subr.mxu0 0.0
      %259 = vmatpush2.msra.mxu0 0.0
      %260 = vmatprep.subr.mxu0 0.0
      %261 = vmatpush2.msra.mxu0 0.0
      %262 = vmatprep.subr.mxu0 0.0
      %263 = vmatpush2.msra.mxu0 0.0
      %264 = vmatprep.subr.mxu0 0.0
      %265 = vmatpush2.msra.mxu0 0.0
      %266 = vmatprep.subr.mxu0 0.0
      %267 = vmatpush2.msra.mxu0 0.0
      %268 = vmatprep.subr.mxu0 0.0
      %269 = vmatpush2.msra.mxu0 0.0
      %270 = vmatprep.subr.mxu0 0.0
      %271 = vmatpush2.msra.mxu0 0.0
      %272 = vmatprep.subr.mxu0 0.0
      %273 = vmatpush2.msra.mxu0 0.0
      %274 = vmatprep.subr.mxu0 0.0
      %275 = vmatpush2.msra.mxu0 0.0
      %276 = vmatprep.subr.mxu0 0.0
      %277 = vmatpush2.msra.mxu0 0.0
      %278 = vmatprep.subr.mxu0 0.0
      %279 = vmatpush2.msra.mxu0 0.0
      %280 = vmatprep.subr.mxu0 0.0
      %281 = vmatpush2.msra.mxu0 0.0
      %282 = vmatprep.subr.mxu0 0.0
      %283 = vmatpush2.msra.mxu0 0.0
      %284 = vmatprep.subr.mxu0 0.0
      %285 = vmatpush2.msra.mxu0 0.0
      %286 = vmatprep.subr.mxu0 0.0
      %287 = vmatpush2.msra.mxu0 0.0
      %288 = vmatprep.mubr.f32.mxu0 0.0
      %289 = vmatmul.mubr.f32.gmra.mxu0 %v197
      %v290 = vpop.f32.mrf.mxu0
      %v291 = vadd.f32 0.0, %v290
      %v292 = vpop.f32.mrf.mxu0
      %293 = vmatprep.mubr.f32.mxu0 0.0
      %294 = vmatmul.mubr.f32.gmra.mxu0 %v200
      %v295 = vpop.f32.mrf.mxu0
      %v296 = vadd.f32 0.0, %v295
      %v297 = vpop.f32.mrf.mxu0
      %298 = vmatprep.mubr.f32.mxu0 0.0
      %299 = vmatmul.mubr.f32.gmra.mxu0 %v203
      %v300 = vpop.f32.mrf.mxu0
      %v301 = vadd.f32 0.0, %v300
      %v302 = vpop.f32.mrf.mxu0
      %303 = vmatprep.mubr.f32.mxu0 0.0
      %304 = vmatmul.mubr.f32.gmra.mxu0 %v206
      %v305 = vpop.f32.mrf.mxu0
      %v306 = vadd.f32 0.0, %v305
      %v307 = vpop.f32.mrf.mxu0
      %308 = vmatprep.mubr.f32.mxu0 0.0
      %309 = vmatmul.mubr.f32.gmra.mxu0 %v209
      %v310 = vpop.f32.mrf.mxu0
      %v311 = vadd.f32 0.0, %v310
      %v312 = vpop.f32.mrf.mxu0
      %313 = vmatprep.mubr.f32.mxu0 0.0
      %314 = vmatmul.mubr.f32.gmra.mxu0 %v212
      %v315 = vpop.f32.mrf.mxu0
      %v316 = vadd.f32 0.0, %v315
      %v317 = vpop.f32.mrf.mxu0
      %318 = vmatprep.mubr.f32.mxu0 0.0
      %319 = vmatmul.mubr.f32.gmra.mxu0 %v215
      %v320 = vpop.f32.mrf.mxu0
      %v321 = vadd.f32 0.0, %v320
      %v322 = vpop.f32.mrf.mxu0
      %323 = vmatprep.mubr.f32.mxu0 0.0
      %324 = vmatmul.mubr.f32.gmra.mxu0 %v218
      %v325 = vpop.f32.mrf.mxu0
      %v326 = vadd.f32 0.0, %v325
      %v327 = vpop.f32.mrf.mxu0
      %328 = vdwg.mxu0
      %v329 = vmax.f32 %v291, 0.0
      %v330 = vmax.f32 %v296, 0.0
      %v331 = vmax.f32 %v301, 0.0
      %v332 = vmax.f32 %v306, 0.0
      %v333 = vmax.f32 %v311, 0.0
      %v334 = vmax.f32 %v316, 0.0
      %v335 = vmax.f32 %v321, 0.0
      %v336 = vmax.f32 %v326, 0.0
      %v337 = vsub.f32 0.0, %v329
      %v338 = vsub.f32 0.0, %v330
      %v339 = vsub.f32 0.0, %v331
      %v340 = vsub.f32 0.0, %v332
      %v341 = vsub.f32 0.0, %v333
      %v342 = vsub.f32 0.0, %v334
      %v343 = vsub.f32 0.0, %v335
      %v344 = vsub.f32 0.0, %v336
      %v345 = vmul.f32 %v337, 1.442695
      %v346 = vpow.pop %v345
      %v347 = vmul.f32 %v338, 1.442695
      %v348 = vpow.pop %v347
      %v349 = vmul.f32 %v339, 1.442695
      %v350 = vpow.pop %v349
      %v351 = vmul.f32 %v340, 1.442695
      %v352 = vpow.pop %v351
      %v353 = vmul.f32 %v341, 1.442695
      %v354 = vpow.pop %v353
      %v355 = vmul.f32 %v342, 1.442695
      %v356 = vpow.pop %v355
      %v357 = vmul.f32 %v343, 1.442695
      %v358 = vpow.pop %v357
      %v359 = vmul.f32 %v344, 1.442695
      %v360 = vpow.pop %v359
      %361 = vst [vmem:[%s182] sm:$0xff] %v346
      %362 = vst [vmem:[%s182 + $0x8] sm:$0xff] %v348
      %363 = vst [vmem:[%s182 + $0x10] sm:$0xff] %v350
      %364 = vst [vmem:[%s182 + $0x18] sm:$0xff] %v352
      %365 = vst [vmem:[%s182 + $0x20] sm:$0xff] %v354
      %366 = vst [vmem:[%s182 + $0x28] sm:$0xff] %v356
      %367 = vst [vmem:[%s182 + $0x30] sm:$0xff] %v358
      %368 = vst [vmem:[%s182 + $0x38] sm:$0xff] %v360
      %s369 = smul.u32 8, %s17
      %p370 = scmp.lt.s32.totalorder %s369, 15
      %s371 = scalar_select %p370, %s369, 15
      %p372 = scmp.lt.s32.totalorder %s18, 0
      %s373 = scalar_select %p372, %s18, 0
      %s374 = sadd.s32 %s373, %s371
      %s375 = smul.addr %s374, 8
      %s376 = scalar_lea.vmem %s2, %s375
      // Predicated region
      $region29: #{tpu_custom_call.1} parent=27 // pred_check
        %p377 = pneg %p97
      $region30: #{tpu_custom_call.1} parent=27 // pred_check_branch
        %379 = sbr.rel (%p377) target = $region32
      $region31: #{tpu_custom_call.1} parent=27 // pred_region
        %s380 = smul.u32 8, %s17
      $region32: #{tpu_custom_call.1} parent=27 // pred_fallthru
        _
    $region28: #{tpu_custom_call.1} parent=5 // pred_fallthru
      _
    %p381 = scmp.le.s32.totalorder 2, %s8
    // Predicated region
    $region33: #{tpu_custom_call.1} parent=5 // pred_check
      %p382 = pneg %p381
    $region34: #{tpu_custom_call.1} parent=5 // pred_check_branch
      %384 = sbr.rel (%p382) target = $region36
    $region35: #{tpu_custom_call.1} parent=5 // pred_region
      %s385 = ssub.s32 %s8, 2
      // Predicated region
      $region37: #{tpu_custom_call.1} parent=35 // pred_check
        %p386 = pneg %p103
      $region38: #{tpu_custom_call.1} parent=35 // pred_check_branch
        %388 = sbr.rel (%p386) target = $region40
      $region39: #{tpu_custom_call.1} parent=35 // pred_region
        %s389 = smul.u32 8, %s19
        %p390 = scmp.lt.s32.totalorder %s389, 15
        %s391 = scalar_select %p390, %s389, 15
        %p392 = scmp.lt.s32.totalorder %s20, 0
        %s393 = scalar_select %p392, %s20, 0
        %s394 = sadd.s32 %s393, %s391
        %s395 = smul.addr %s394, 8
        %s396 = scalar_lea.vmem %s2, %s395
      $region40: #{tpu_custom_call.1} parent=35 // pred_fallthru
        _
    $region36: #{tpu_custom_call.1} parent=5 // pred_fallthru
      _
  $region6: #{tpu_custom_call.1} parent=0 // loop_footer
    %s12 = sadd.s32 1, %s8
  $region7: #{tpu_custom_call.1} parent=0 // loop_footer_branch
    %7 = sbr.rel target = $region3
  $region8: #{tpu_custom_call.1} parent=0 // loop_exit
    _

</llo_original>
